<compile_context>
chip_gen: v7x
topology: tpu7x:2x2x1
jax: 0.10.0
libtpu: 0.0.40
codegen_flags: <defaults>
</compile_context>

<pallas_src>
import functools

import jax
import jax.numpy as jnp
from jax.experimental import pallas as pl
from jax.experimental.pallas import tpu as pltpu


def _conv1d_kernel(x_ref, w_ref, b_ref, o_ref, *,
                   kernel_size, padding, dilation, l_out):
    # x_ref: (1, C_in, L)        one batch element, PyTorch NCL layout
    # w_ref: (C_out, K*C_in)     im2col-flattened weight (k-major rows)
    # b_ref: (C_out, 1)          bias, broadcast over the L_out lane axis
    # o_ref: (1, C_out, L_out)   NCL output block
    c_in = x_ref.shape[1]
    xn = x_ref[0]                                        # (C_in, L)

    if padding > 0:
        zeros = jnp.zeros((c_in, padding), dtype=xn.dtype)
        xn = jnp.concatenate([zeros, xn, zeros], axis=-1)  # (C_in, L + 2*pad)

    # Gather the K dilated taps (static lane slices) and stack them along the
    # sublane / contraction axis -> (K*C_in, L_out).  Row order k*C_in + c
    # matches the wrapper's weight flattening.
    taps = [xn[:, k * dilation:k * dilation + l_out]
            for k in range(kernel_size)]
    patches = jnp.concatenate(taps, axis=0) if kernel_size > 1 else taps[0]

    # Single MXU matmul, output already in (C_out, L_out) = NCL orientation.
    acc = jnp.dot(w_ref[...], patches, preferred_element_type=jnp.float32)
    acc = acc + b_ref[...].astype(jnp.float32)           # (C_out, 1) broadcast
    o_ref[0] = acc.astype(o_ref.dtype)


def one_conv_forward(x_ncl, weight, bias, *, padding, dilation):
    """Conv1d forward matching torch.nn.Conv1d(stride=1).

    x_ncl:  (N, C_in, L)       -- PyTorch NCL layout (used as-is, no transpose)
    weight: (C_out, C_in, K)   -- PyTorch Conv1d weight layout
    bias:   (C_out,)
    returns (N, C_out, L_out)  -- PyTorch NCL layout, emitted directly
    """
    n, c_in, length = x_ncl.shape
    c_out, _, k = weight.shape
    l_out = length + 2 * padding - dilation * (k - 1)

    # Tiny, one-time weight/bias reshapes (parameter-sized, not activation-
    # sized): rows ordered k*C_in + c to match the kernel's tap stacking.
    w_flat = jnp.transpose(weight, (2, 1, 0)).reshape(k * c_in, c_out).T
    w_flat = jnp.asarray(w_flat)                          # (C_out, K*C_in)
    b_col = bias.reshape(c_out, 1)                        # (C_out, 1)

    kernel = functools.partial(
        _conv1d_kernel, kernel_size=k, padding=padding,
        dilation=dilation, l_out=l_out)

    cost = pl.CostEstimate(
        flops=2 * n * l_out * k * c_in * c_out,
        transcendentals=0,
        bytes_accessed=4 * (n * c_in * length + c_out * k * c_in
                            + c_out + n * c_out * l_out))

    y = pl.pallas_call(
        kernel,
        out_shape=jax.ShapeDtypeStruct((n, c_out, l_out), x_ncl.dtype),
        grid_spec=pltpu.PrefetchScalarGridSpec(
            num_scalar_prefetch=0,
            grid=(n,),                                    # one batch elem/step
            in_specs=[
                pl.BlockSpec((1, c_in, length), lambda i: (i, 0, 0)),
                pl.BlockSpec((c_out, k * c_in), lambda i: (0, 0)),
                pl.BlockSpec((c_out, 1), lambda i: (0, 0)),
            ],
            out_specs=pl.BlockSpec((1, c_out, l_out), lambda i: (i, 0, 0)),
        ),
        compiler_params=pltpu.CompilerParams(
            dimension_semantics=("parallel",)),           # v7x: 2 TCs
        cost_estimate=cost,
    )(x_ncl, w_flat, b_col)

    return y                                              # (N, C_out, L_out)


if __name__ == "__main__":
    # Module config (small, consistent with oneConv(in, out, ks, pad, dil)).
    in_channels = 4
    out_channels = 8
    kernel_size = 3
    padding = 1
    dilation = 1

    batch = 2
    length = 16

    key = jax.random.PRNGKey(0)
    kx, kw, kb = jax.random.split(key, 3)

    x = jax.random.normal(kx, (batch, in_channels, length), dtype=jnp.float32)
    # Deterministic in-script parameter init (uniform, like PyTorch's default range).
    fan_in = in_channels * kernel_size
    bound = 1.0 / (fan_in ** 0.5)
    weight = jax.random.uniform(
        kw, (out_channels, in_channels, kernel_size),
        minval=-bound, maxval=bound, dtype=jnp.float32)
    bias = jax.random.uniform(
        kb, (out_channels,), minval=-bound, maxval=bound, dtype=jnp.float32)

    y = one_conv_forward(x, weight, bias, padding=padding, dilation=dilation)
    y = jax.block_until_ready(y)

    # Sanity check against XLA's conv (not required for output).
    y_ref = jax.lax.conv_general_dilated(
        x, weight, window_strides=(1,), padding=[(padding, padding)],
        rhs_dilation=(dilation,),
        dimension_numbers=("NCH", "OIH", "NCH")) + bias[None, :, None]
    assert y.shape == (batch, out_channels, length)
    assert jnp.allclose(y, y_ref, atol=1e-5, rtol=1e-5)

    print("KERNEL_OK")
</pallas_src>

<mosaic_0001>
module attributes {stable_mosaic.version = 11 : i64} {
  func.func @_conv1d_kernel(%arg0: i32, %arg1: memref<1x4x16xf32, #tpu.memory_space<vmem>>, %arg2: memref<8x12xf32, #tpu.memory_space<vmem>>, %arg3: memref<8x1xf32, #tpu.memory_space<vmem>>, %arg4: memref<1x8x16xf32, #tpu.memory_space<vmem>>) attributes {dimension_semantics = [#tpu.dimension_semantics<parallel>], iteration_bounds = array<i64: 2>, scalar_prefetch = 0 : i64, scratch_operands = 0 : i64, tpu.core_type = #tpu.core_type<tc>, window_params = [{transform_indices = @transform_0, window_bounds = array<i64: 1, 4, 16>}, {pipeline_mode = #tpu.pipeline_mode<synchronous>, transform_indices = @transform_1, window_bounds = array<i64: 8, 12>}, {pipeline_mode = #tpu.pipeline_mode<synchronous>, transform_indices = @transform_2, window_bounds = array<i64: 8, 1>}, {transform_indices = @transform_3, window_bounds = array<i64: 1, 8, 16>}]} {
    %c0 = arith.constant 0 : index
    %c0_0 = arith.constant 0 : index
    %c0_1 = arith.constant 0 : index
    %0 = vector.load %arg1[%c0, %c0_0, %c0_1] : memref<1x4x16xf32, #tpu.memory_space<vmem>>, vector<1x4x16xf32>
    %1 = vector.shape_cast %0 : vector<1x4x16xf32> to vector<4x16xf32>
    %cst = arith.constant 0.000000e+00 : f32
    %2 = vector.broadcast %cst : f32 to vector<4x1xf32>
    %3 = tpu.concatenate %2, %1, %2 in 1 : vector<4x1xf32>, vector<4x16xf32>, vector<4x1xf32> -> vector<4x18xf32>
    %4 = vector.extract_strided_slice %3 {offsets = [0, 0], sizes = [4, 16], strides = [1, 1]} : vector<4x18xf32> to vector<4x16xf32>
    %5 = vector.extract_strided_slice %3 {offsets = [0, 1], sizes = [4, 16], strides = [1, 1]} : vector<4x18xf32> to vector<4x16xf32>
    %6 = vector.extract_strided_slice %3 {offsets = [0, 2], sizes = [4, 16], strides = [1, 1]} : vector<4x18xf32> to vector<4x16xf32>
    %7 = tpu.concatenate %4, %5, %6 in 0 : vector<4x16xf32>, vector<4x16xf32>, vector<4x16xf32> -> vector<12x16xf32>
    %c0_2 = arith.constant 0 : index
    %c0_3 = arith.constant 0 : index
    %8 = vector.load %arg2[%c0_2, %c0_3] : memref<8x12xf32, #tpu.memory_space<vmem>>, vector<8x12xf32>
    %cst_4 = arith.constant dense<0.000000e+00> : vector<8x16xf32>
    %9 = tpu.matmul %8, %7, %cst_4 {dimension_numbers = #tpu.dot_dimension_numbers<[1], [0], [0], [1], [0, 0, 1, 1], [], []>} : vector<8x12xf32>, vector<12x16xf32>, vector<8x16xf32> -> vector<8x16xf32>
    %c0_5 = arith.constant 0 : index
    %c0_6 = arith.constant 0 : index
    %10 = vector.load %arg3[%c0_5, %c0_6] : memref<8x1xf32, #tpu.memory_space<vmem>>, vector<8x1xf32>
    %11 = vector.broadcast %10 : vector<8x1xf32> to vector<8x16xf32>
    %12 = arith.addf %9, %11 : vector<8x16xf32>
    %c0_7 = arith.constant 0 : index
    %c0_8 = arith.constant 0 : index
    %c0_9 = arith.constant 0 : index
    %13 = vector.load %arg4[%c0_7, %c0_8, %c0_9] : memref<1x8x16xf32, #tpu.memory_space<vmem>>, vector<1x8x16xf32>
    %14 = vector.shape_cast %13 : vector<1x8x16xf32> to vector<8x16xf32>
    %15 = vector.shape_cast %12 : vector<8x16xf32> to vector<1x8x16xf32>
    tpu.vector_store %arg4[%c0_7, %c0_8, %c0_9], %15 {strides = array<i32>} : memref<1x8x16xf32, #tpu.memory_space<vmem>>, vector<1x8x16xf32>,
    return
  }
  func.func @transform_0(%arg0: i32) -> (i32, i32, i32) {
    %c0_i32 = arith.constant 0 : i32
    %c0_i32_0 = arith.constant 0 : i32
    %c0_i32_1 = arith.constant 0 : i32
    return %arg0, %c0_i32, %c0_i32_0 : i32, i32, i32
  }
  func.func @transform_1(%arg0: i32) -> (i32, i32) {
    %c0_i32 = arith.constant 0 : i32
    %c0_i32_0 = arith.constant 0 : i32
    %c0_i32_1 = arith.constant 0 : i32
    return %c0_i32, %c0_i32_0 : i32, i32
  }
  func.func @transform_2(%arg0: i32) -> (i32, i32) {
    %c0_i32 = arith.constant 0 : i32
    %c0_i32_0 = arith.constant 0 : i32
    %c0_i32_1 = arith.constant 0 : i32
    return %c0_i32, %c0_i32_0 : i32, i32
  }
  func.func @transform_3(%arg0: i32) -> (i32, i32, i32) {
    %c0_i32 = arith.constant 0 : i32
    %c0_i32_0 = arith.constant 0 : i32
    %c0_i32_1 = arith.constant 0 : i32
    return %arg0, %c0_i32, %c0_i32_0 : i32, i32, i32
  }
}

</mosaic_0001>

<llo_original>
// kernel: tpu_custom_call.1
$region0: #{tpu_custom_call.1}
  #allocation0 [shape = 'u32[]', space=smem, size = 0x4, offset = 0x4, fixed_abs, tag = 'smem constant byte address 0x4 - core index']
  #allocation1 [shape = 'u32[144,128]{1,0:T(1,128)}', space=vmem, size = 0x12000, scoped, tag = 'internal scratch']
  %s0 = inlined_call_operand.vmem [shape: f32[2,4,16], index: 0, kind: input, shape index: {}]
  %s1 = inlined_call_operand.hbm [shape: f32[8,12], index: 1, kind: input, shape index: {}]
  %s2 = inlined_call_operand.vmem [shape: f32[8,1], index: 2, kind: input, shape index: {}]
  %s3 = inlined_call_operand.hbm [shape: f32[2,8,16], index: 3, kind: output, shape index: {}]
  %s4 = sld [smem:[#allocation0]]
  $region49: #{tpu_custom_call.1} parent=0
    _
  %s6 = ssub.s32 1, %s4
  %s7 = scalar_select 0, %s6, %s4
  $region1: #{tpu_custom_call.1} parent=0
    #allocation2 [shape = 'u8[4096]{0}', space=vmem, size = 0x1000, scoped, tag = 'input window, operand 1, single buffered']
    #allocation3 [shape = 's32[2]{0}', space=sflag, size = 0x8, scoped, tag = 'scoped memory for tpu_custom_call.1']
    #allocation4 [shape = 's32[2]{0}', space=sflag, size = 0x8, scoped, tag = 'scoped memory for tpu_custom_call.1']
    #allocation5 [shape = 'u8[8192]{0}', space=vmem, size = 0x2000, scoped, tag = 'output window, operand 0']
    %8 = vsyncpa [#allocation3], 0
    %9 = vsyncpa [#allocation4], 0
    %s10 = scalar_lea.sflag [#allocation4], 1
    %11 = vsyncpa %s10, 0
    loop: start=0, step=1, limit=4
    $region2: #{tpu_custom_call.1} parent=1 // loop_pre_header
      _
    $region3: #{tpu_custom_call.1} parent=1 // loop_header
      %s13 = sphi 0, %s17
      %p14 = scmp.ge.s32.totalorder %s13, 4
      %s23 = sphi 0, %s25
      %s26 = sphi 0, %s23
      %s27 = sphi 0, %s26
      %s43 = sphi 0, %s27
      %s47 = sphi 0, %s47
      %s49 = sphi 0, %s47
      %s50 = sphi 0, %s49
      %s64 = sphi 0, %s50
      %s68 = sphi 0, %s68
      %s70 = sphi 0, %s68
      %s71 = sphi 0, %s70
      %s85 = sphi 0, %s71
      %s91 = sphi 0, %s93
      %s94 = sphi 0, %s91
      %s95 = sphi 0, %s94
      %s111 = sphi 0, %s95
    $region4: #{tpu_custom_call.1} parent=1 // loop_header_branch
      %16 = sbr.rel (%p14) target = $region8
    $region5: #{tpu_custom_call.1} parent=1 // loop_body
      %s18 = ssub.s32 %s13, 1
      %s19 = ssub.s32 %s13, 2
      %s20 = sadd.s32 %s13, 1
      %s21 = ssub.s32 %s13, %s20
      %p22 = scmp.eq.s32.totalorder %s21, 0
      %s24 = sadd.s32 %s23, 1
      %s25 = scalar_select %p22, %s23, %s24
      %p28 = pneg %p22
      %p29 = scmp.eq.s32.totalorder %s13, 1
      %p30 = por %p28, %p29
      %p31 = scmp.ne.s32.totalorder %s23, %s26
      %p32 = scmp.eq.s32.totalorder %s13, 0
      %p33 = por %p31, %p32
      %p34 = scmp.ne.s32.totalorder %s23, %s26
      %p35 = scmp.eq.s32.totalorder %s18, 1
      %p36 = por %p34, %p35
      %p37 = scmp.ne.s32.totalorder %s26, %s27
      %p38 = scmp.eq.s32.totalorder %s18, 0
      %p39 = por %p37, %p38
      %p40 = scmp.ne.s32.totalorder %s26, %s27
      %p41 = scmp.eq.s32.totalorder %s19, 1
      %p42 = por %p40, %p41
      %p44 = scmp.ne.s32.totalorder %s27, %s43
      %p45 = scmp.eq.s32.totalorder %s19, 0
      %p46 = por %p44, %p45
      %s48 = sadd.s32 %s47, 1
      %p51 = scmp.eq.s32.totalorder %s13, 1
      %p52 = scmp.ne.s32.totalorder %s47, %s49
      %p53 = scmp.eq.s32.totalorder %s13, 0
      %p54 = por %p52, %p53
      %p55 = scmp.ne.s32.totalorder %s47, %s49
      %p56 = scmp.eq.s32.totalorder %s18, 1
      %p57 = por %p55, %p56
      %p58 = scmp.ne.s32.totalorder %s49, %s50
      %p59 = scmp.eq.s32.totalorder %s18, 0
      %p60 = por %p58, %p59
      %p61 = scmp.ne.s32.totalorder %s49, %s50
      %p62 = scmp.eq.s32.totalorder %s19, 1
      %p63 = por %p61, %p62
      %p65 = scmp.ne.s32.totalorder %s50, %s64
      %p66 = scmp.eq.s32.totalorder %s19, 0
      %p67 = por %p65, %p66
      %s69 = sadd.s32 %s68, 1
      %p72 = scmp.eq.s32.totalorder %s13, 1
      %p73 = scmp.ne.s32.totalorder %s68, %s70
      %p74 = scmp.eq.s32.totalorder %s13, 0
      %p75 = por %p73, %p74
      %p76 = scmp.ne.s32.totalorder %s68, %s70
      %p77 = scmp.eq.s32.totalorder %s18, 1
      %p78 = por %p76, %p77
      %p79 = scmp.ne.s32.totalorder %s70, %s71
      %p80 = scmp.eq.s32.totalorder %s18, 0
      %p81 = por %p79, %p80
      %p82 = scmp.ne.s32.totalorder %s70, %s71
      %p83 = scmp.eq.s32.totalorder %s19, 1
      %p84 = por %p82, %p83
      %p86 = scmp.ne.s32.totalorder %s71, %s85
      %p87 = scmp.eq.s32.totalorder %s19, 0
      %p88 = por %p86, %p87
      %s89 = ssub.s32 %s13, %s20
      %p90 = scmp.eq.s32.totalorder %s89, 0
      %s92 = sadd.s32 %s91, 1
      %s93 = scalar_select %p90, %s91, %s92
      %p96 = pneg %p90
      %p97 = scmp.eq.s32.totalorder %s13, 1
      %p98 = por %p96, %p97
      %p99 = scmp.ne.s32.totalorder %s91, %s94
      %p100 = scmp.eq.s32.totalorder %s13, 0
      %p101 = por %p99, %p100
      %p102 = scmp.ne.s32.totalorder %s91, %s94
      %p103 = scmp.eq.s32.totalorder %s18, 1
      %p104 = por %p102, %p103
      %p105 = scmp.ne.s32.totalorder %s94, %s95
      %p106 = scmp.eq.s32.totalorder %s18, 0
      %p107 = por %p105, %p106
      %p108 = scmp.ne.s32.totalorder %s94, %s95
      %p109 = scmp.eq.s32.totalorder %s19, 1
      %p110 = por %p108, %p109
      %p112 = scmp.ne.s32.totalorder %s95, %s111
      %p113 = scmp.eq.s32.totalorder %s19, 0
      %p114 = por %p112, %p113
      %p115 = scmp.le.s32.totalorder 1, %s13
      %p116 = scmp.lt.s32.totalorder %s13, 3
      %p117 = pnand %p115, %p116
      %p118 = pneg %p117
      // Predicated region
      $region9: #{tpu_custom_call.1} parent=5 // pred_check
        _
      $region10: #{tpu_custom_call.1} parent=5 // pred_check_branch
        %120 = sbr.rel (%p117) target = $region12
      $region11: #{tpu_custom_call.1} parent=5 // pred_region
        %s121 = ssub.s32 %s13, 1
        // Predicated region
        $region13: #{tpu_custom_call.1} parent=11 // pred_check
          %p122 = pneg %p60
        $region14: #{tpu_custom_call.1} parent=11 // pred_check_branch
          %124 = sbr.rel (%p122) target = $region16
        $region15: #{tpu_custom_call.1} parent=11 // pred_region
          %s126 = ssub.s32 128, 128
          %127 = vsyncadd [#allocation3], %s126
          %s129 = sshll.u32 [#allocation2], 4
          %s130 = int_to_ptr.vmem [resolvable:$true] %s129
          %132 = dma.hbm_to_vmem [thread:$0]  %s1, 128, %s130, [#allocation3]
        $region16: #{tpu_custom_call.1} parent=11 // pred_fallthru
          _
        // Predicated region
        $region17: #{tpu_custom_call.1} parent=11 // pred_check
          %p133 = pneg %p81
        $region18: #{tpu_custom_call.1} parent=11 // pred_check_branch
          %135 = sbr.rel (%p133) target = $region20
        $region19: #{tpu_custom_call.1} parent=11 // pred_region
          _
        $region20: #{tpu_custom_call.1} parent=11 // pred_fallthru
          _
      $region12: #{tpu_custom_call.1} parent=5 // pred_fallthru
        _
      %p136 = scmp.lt.s32.totalorder %s13, 2
      // Predicated region
      $region21: #{tpu_custom_call.1} parent=5 // pred_check
        %p137 = pneg %p136
      $region22: #{tpu_custom_call.1} parent=5 // pred_check_branch
        %139 = sbr.rel (%p137) target = $region24
      $region23: #{tpu_custom_call.1} parent=5 // pred_region
        // Predicated region
        $region25: #{tpu_custom_call.1} parent=23 // pred_check
          %p140 = pneg %p33
        $region26: #{tpu_custom_call.1} parent=23 // pred_check_branch
          %142 = sbr.rel (%p140) target = $region28
        $region27: #{tpu_custom_call.1} parent=23 // pred_region
          %p143 = scmp.lt.s32.totalorder %s13, 1
          %s144 = scalar_select %p143, %s13, 1
          %s145 = smul.addr %s144, 4
          %s146 = scalar_lea.vmem %s0, %s145
        $region28: #{tpu_custom_call.1} parent=23 // pred_fallthru
          _
      $region24: #{tpu_custom_call.1} parent=5 // pred_fallthru
        _
      %p147 = scmp.le.s32.totalorder 1, %s13
      %p148 = scmp.lt.s32.totalorder %s13, 3
      %p149 = pnand %p147, %p148
      %p150 = pneg %p149
      // Predicated region
      $region29: #{tpu_custom_call.1} parent=5 // pred_check
        _
      $region30: #{tpu_custom_call.1} parent=5 // pred_check_branch
        %152 = sbr.rel (%p149) target = $region32
      $region31: #{tpu_custom_call.1} parent=5 // pred_region
        %s153 = ssub.s32 %s13, 1
        // Predicated region
        $region33: #{tpu_custom_call.1} parent=31 // pred_check
          %p154 = pneg %p60
        $region34: #{tpu_custom_call.1} parent=31 // pred_check_branch
          %156 = sbr.rel (%p154) target = $region36
        $region35: #{tpu_custom_call.1} parent=31 // pred_region
          %157 = dma.done [#allocation3], 128
        $region36: #{tpu_custom_call.1} parent=31 // pred_fallthru
          _
        %p158 = scmp.lt.s32.totalorder %s18, 1
        %s159 = scalar_select %p158, %s18, 1
        %s160 = smul.addr %s159, 4
        %s161 = scalar_lea.vmem %s0, %s160
        %p162 = pneg %p39
        %p163 = pneg %p36
        %p164 = pneg %p60
        %p165 = pneg %p57
        %p166 = pneg %p81
        %p167 = pneg %p78
        %p168 = pneg %p107
        %p169 = pneg %p104
        %s170 = sand.u32 %s94, 1
        %s171 = scalar_lea.sflag [#allocation4], %s170
        %s172 = sand.u32 %s94, 1
        %s173 = smul.addr %s172, 8
        %s174 = scalar_lea.vmem [#allocation5], %s173
        %p175 = scmp.lt.s32.totalorder %s18, 1
        %s176 = scalar_select %p175, %s18, 1
        %s177 = smul.addr %s176, 4
        %s178 = scalar_lea.vmem %s0, %s177
        %v179 = vld [vmem:[%s178] sm:$0xf]
        %181 = vrot.lane.b32.xlu0 %v179, 1
        %v182 = vpop.permute.xlu0 %181
        %vm184 = vcmask 7168
        %v185 = vsel %vm184, 0.0, %v182
        %vm186 = vcmask 138240
        %v187 = vsel %vm186, %v185, 0.0
        %v189 = vrot.slane %v187, 4
        %190 = vrot.lane.b32.xlu0 %v189, 127
        %v191 = vpop.permute.xlu0 %190
        %193 = vrot.lane.b32.xlu0 %v187, 126
        %v194 = vpop.permute.xlu0 %193
        %vm195 = vcmask 1043456
        %v196 = vsel %vm195, %v187, %v191
        %v197 = vld [vmem:[#allocation2] sm:$0xff]
        %v198 = vld [vmem:[%s2] sm:$0xff]
        %200 = vset.pattern.permute.xlu0 0
        %201 = vperm.xlu0 %200, %v198
        %v202 = vpop.permute.xlu0 %201
        %vm204 = vcmask 97280
        %v206 = vsel %vm204, %v197, 0
        %v208 = vsel %vm195, %v194, 0
        %210 = vmatprep.subr.mxu0 0.0
        %211 = vmatpush1.msra.mxu0 %v196
        %212 = vmatprep.subr.mxu0 0.0
        %213 = vmatpush1.msra.mxu0 %v208
        %214 = vmatprep.subr.mxu0 0.0
        %215 = vmatpush1.msra.mxu0 0.0
        %216 = vmatprep.subr.mxu0 0.0
        %217 = vmatpush1.msra.mxu0 0.0
        %218 = vmatprep.subr.mxu0 0.0
        %219 = vmatpush1.msra.mxu0 0.0
        %220 = vmatprep.subr.mxu0 0.0
        %221 = vmatpush1.msra.mxu0 0.0
        %222 = vmatprep.subr.mxu0 0.0
        %223 = vmatpush1.msra.mxu0 0.0
        %224 = vmatprep.subr.mxu0 0.0
        %225 = vmatpush1.msra.mxu0 0.0
        %226 = vmatprep.subr.mxu0 0.0
        %227 = vmatpush1.msra.mxu0 0.0
        %228 = vmatprep.subr.mxu0 0.0
        %229 = vmatpush1.msra.mxu0 0.0
        %230 = vmatprep.subr.mxu0 0.0
        %231 = vmatpush1.msra.mxu0 0.0
        %232 = vmatprep.subr.mxu0 0.0
        %233 = vmatpush1.msra.mxu0 0.0
        %234 = vmatprep.subr.mxu0 0.0
        %235 = vmatpush1.msra.mxu0 0.0
        %236 = vmatprep.subr.mxu0 0.0
        %237 = vmatpush1.msra.mxu0 0.0
        %238 = vmatprep.subr.mxu0 0.0
        %239 = vmatpush1.msra.mxu0 0.0
        %240 = vmatprep.subr.mxu0 0.0
        %241 = vmatpush1.msra.mxu0 0.0
        %242 = vmatprep.subr.mxu0 0.0
        %243 = vmatpush1.msra.mxu0 0.0
        %244 = vmatprep.subr.mxu0 0.0
        %245 = vmatpush1.msra.mxu0 0.0
        %246 = vmatprep.subr.mxu0 0.0
        %247 = vmatpush1.msra.mxu0 0.0
        %248 = vmatprep.subr.mxu0 0.0
        %249 = vmatpush1.msra.mxu0 0.0
        %250 = vmatprep.subr.mxu0 0.0
        %251 = vmatpush1.msra.mxu0 0.0
        %252 = vmatprep.subr.mxu0 0.0
        %253 = vmatpush1.msra.mxu0 0.0
        %254 = vmatprep.subr.mxu0 0.0
        %255 = vmatpush1.msra.mxu0 0.0
        %256 = vmatprep.subr.mxu0 0.0
        %257 = vmatpush1.msra.mxu0 0.0
        %258 = vmatprep.subr.mxu0 0.0
        %259 = vmatpush1.msra.mxu0 0.0
        %260 = vmatprep.subr.mxu0 0.0
        %261 = vmatpush1.msra.mxu0 0.0
        %262 = vmatprep.subr.mxu0 0.0
        %263 = vmatpush1.msra.mxu0 0.0
        %264 = vmatprep.subr.mxu0 0.0
        %265 = vmatpush1.msra.mxu0 0.0
        %266 = vmatprep.subr.mxu0 0.0
        %267 = vmatpush1.msra.mxu0 0.0
        %268 = vmatprep.subr.mxu0 0.0
        %269 = vmatpush1.msra.mxu0 0.0
        %270 = vmatprep.subr.mxu0 0.0
        %271 = vmatpush1.msra.mxu0 0.0
        %272 = vmatprep.subr.mxu0 0.0
        %273 = vmatpush1.msra.mxu0 0.0
        %274 = vmatprep.mubr.f32.mxu0 0.0
        %275 = vmatmul.mubr.f32.gmra.mrb[0].mxu0 %v206
        %v276 = vpop.f32.mrb[0].mxu0
        %v277 = vadd.f32 %v202, %v276
        %v278 = vpop.f32.mrb[0].mxu0
        %279 = vdwg.mxu0
        %vm280 = vcmask 130048
        %281 = vst.msk [vmem:[%s174] sm:$0xff] %vm280, %v277
        %s282 = sand.u32 %s94, 1
        %s283 = scalar_lea.sflag [#allocation4], %s282
        %s284 = sand.u32 %s94, 1
        %s285 = smul.addr %s284, 8
        %s286 = scalar_lea.vmem [#allocation5], %s285
        // Predicated region
        $region37: #{tpu_custom_call.1} parent=31 // pred_check
          %p287 = pneg %p104
        $region38: #{tpu_custom_call.1} parent=31 // pred_check_branch
          %289 = sbr.rel (%p287) target = $region40
        $region39: #{tpu_custom_call.1} parent=31 // pred_region
          %s291 = ssub.s32 128, 128
          %292 = vsyncadd %s283, %s291
          %s293 = smul.addr %s18, 128
          %s294 = scalar_lea.hbm %s3, %s293
          %s296 = sshll.u32 %s286, 4
          %s297 = int_to_ptr.vmem [resolvable:$true] %s296
          %299 = dma.vmem_to_hbm [thread:$0]  %s297, 128, %s294, %s283
        $region40: #{tpu_custom_call.1} parent=31 // pred_fallthru
          _
      $region32: #{tpu_custom_call.1} parent=5 // pred_fallthru
        _
      %p300 = scmp.le.s32.totalorder 2, %s13
      // Predicated region
      $region41: #{tpu_custom_call.1} parent=5 // pred_check
        %p301 = pneg %p300
      $region42: #{tpu_custom_call.1} parent=5 // pred_check_branch
        %303 = sbr.rel (%p301) target = $region44
      $region43: #{tpu_custom_call.1} parent=5 // pred_region
        %s304 = ssub.s32 %s13, 2
        // Predicated region
        $region45: #{tpu_custom_call.1} parent=43 // pred_check
          %p305 = pneg %p110
        $region46: #{tpu_custom_call.1} parent=43 // pred_check_branch
          %307 = sbr.rel (%p305) target = $region48
        $region47: #{tpu_custom_call.1} parent=43 // pred_region
          %s308 = sand.u32 %s95, 1
          %s309 = scalar_lea.sflag [#allocation4], %s308
          %s310 = sand.u32 %s95, 1
          %s311 = smul.addr %s310, 8
          %s312 = scalar_lea.vmem [#allocation5], %s311
          %313 = dma.done %s309, 128
        $region48: #{tpu_custom_call.1} parent=43 // pred_fallthru
          _
      $region44: #{tpu_custom_call.1} parent=5 // pred_fallthru
        _
    $region6: #{tpu_custom_call.1} parent=1 // loop_footer
      %s17 = sadd.s32 1, %s13
    $region7: #{tpu_custom_call.1} parent=1 // loop_footer_branch
      %12 = sbr.rel target = $region3
    $region8: #{tpu_custom_call.1} parent=1 // loop_exit
      _
    %314 = vsyncpa [#allocation3], 1
    %s315 = scalar_lea.sflag [#allocation3], 1
    %316 = vsyncpa %s315, 1
    %317 = vsyncpa [#allocation4], 1
    %s318 = scalar_lea.sflag [#allocation4], 1
    %319 = vsyncpa %s318, 1

</llo_original>
